<compile_context>
chip_gen: v6e
topology: v6e:2x2x1
jax: 0.10.0
libtpu: 0.0.40
codegen_flags: <defaults>
</compile_context>

<pallas_src>
import jax
import jax.numpy as jnp
from jax import lax
from jax.experimental import pallas as pl
from jax.experimental.pallas import tpu as pltpu


def _embedding_kernel(idx_ref, tw0_ref, w1_ref, b1_ref, u_ref, out_ref):
    """Per-block kernel: fused gather+fc0 -> tanh -> fc1+b -> tanh -> U -> L2.

    idx_ref : [TB*N, 1] int32  node indices (TB examples, N nodes each)
    tw0_ref : [V, H]    f32    precomputed table @ W0^T (fully VMEM-resident)
    w1_ref  : [H, H]    bf16   fc1 weight, pre-transposed
    b1_ref  : [1, H]    f32    fc1 bias
    u_ref   : [H, P]    bf16   U weight, pre-transposed (no bias)
    out_ref : [TB, N-1] f32    negative distances
    """
    tbn = idx_ref.shape[0]
    vocab = tw0_ref.shape[0]
    tb, nm1 = out_ref.shape
    n = nm1 + 1

    # ---- fused embedding lookup + fc0: one-hot(indices) @ (table @ W0^T) ----
    # Exact: one 1.0 per row with f32 operands reproduces the f32 TW0 row.
    iota = lax.broadcasted_iota(jnp.int32, (tbn, vocab), 1)
    onehot = jnp.where(iota == idx_ref[...], 1.0, 0.0).astype(jnp.float32)
    h = jnp.dot(onehot, tw0_ref[...], preferred_element_type=jnp.float32)    # [TBN, H]
    h = jnp.tanh(h)

    # ---- fc1 (+bias) -> tanh ----
    h = jnp.dot(h.astype(jnp.bfloat16), w1_ref[...],
                preferred_element_type=jnp.float32) + b1_ref[...]            # [TBN, H]
    h = jnp.tanh(h)

    # ---- U projection ----
    e = jnp.dot(h.astype(jnp.bfloat16), u_ref[...],
                preferred_element_type=jnp.float32)                          # [TBN, P]

    # ---- anchor-vs-others Euclidean distance, per example ----
    e3 = e.reshape(tb, n, e.shape[-1])                                       # [TB, N, P]
    s = e3[:, 0:1, :]                                                        # anchor
    o = e3[:, 1:, :]                                                         # others
    diff = o - s
    d2 = jnp.sum(diff * diff, axis=-1)                                       # [TB, N-1]
    out_ref[...] = -jnp.sqrt(d2)


def _pick_examples_per_block(batch, n, vocab):
    """Examples per grid step: 8-aligned, ~512 MXU rows per step, one-hot block
    kept small in VMEM, and >=2 grid steps when possible (v7x has 2 cores)."""
    tb = max(1, min(batch, 512 // max(n, 1)))
    # keep the [TB*N, V] f32 one-hot under ~4 MiB of VMEM
    max_rows = max(8, (4 * 1024 * 1024) // (4 * max(vocab, 1)))
    tb = min(tb, max(1, max_rows // max(n, 1)))
    tb = max(8, (tb // 8) * 8)                       # multiple of 8 (sublanes)
    while tb > 8 and pl.cdiv(batch, tb) < 2:
        tb = max(8, (tb // 2 // 8) * 8)
    return tb


def embedding_forward(inputs, data_vectors, w0, w1, b1, u):
    """inputs: int32 [B, N] node indices. Returns -dists, float32 [B, N-1]."""
    B, N = inputs.shape
    V, D = data_vectors.shape
    H = w0.shape[0]
    P = u.shape[0]
    Nm1 = N - 1

    tb = _pick_examples_per_block(B, N, V)
    num_blocks = pl.cdiv(B, tb)
    b_pad = num_blocks * tb

    # Flatten (and pad) the index tensor to [B_pad*N, 1] so the kernel's
    # gather + matmuls operate on a single flat M dimension.
    idx = inputs.astype(jnp.int32).reshape(B * N)
    if b_pad != B:
        idx = jnp.concatenate([idx, jnp.zeros(((b_pad - B) * N,), jnp.int32)])
    idx = idx.reshape(b_pad * N, 1)

    # Fold the frozen table into fc0 (both linear, fc0 bias-free):
    #   x @ W0^T == onehot(idx) @ (table @ W0^T)
    tw0 = jnp.dot(data_vectors.astype(jnp.float32), w0.T.astype(jnp.float32),
                  preferred_element_type=jnp.float32,
                  precision=lax.Precision.HIGHEST)            # [V, H] f32

    # Pre-transpose + cast remaining weights once (torch Linear stores [out, in]).
    bf = jnp.bfloat16
    w1t = w1.T.astype(bf)                                     # [H, H]
    ut = u.T.astype(bf)                                       # [H, P]
    b1_2d = b1.reshape(1, H).astype(jnp.float32)              # [1, H]

    tbn = tb * N
    out = pl.pallas_call(
        _embedding_kernel,
        out_shape=jax.ShapeDtypeStruct((b_pad, Nm1), jnp.float32),
        grid_spec=pltpu.PrefetchScalarGridSpec(
            num_scalar_prefetch=0,
            grid=(num_blocks,),
            in_specs=[
                pl.BlockSpec((tbn, 1), lambda i: (i, 0)),   # node indices
                pl.BlockSpec((V, H), lambda i: (0, 0)),     # table @ fc0^T (resident)
                pl.BlockSpec((H, H), lambda i: (0, 0)),     # fc1^T
                pl.BlockSpec((1, H), lambda i: (0, 0)),     # fc1 bias
                pl.BlockSpec((H, P), lambda i: (0, 0)),     # U^T
            ],
            out_specs=pl.BlockSpec((tb, Nm1), lambda i: (i, 0)),
        ),
        compiler_params=pltpu.CompilerParams(
            dimension_semantics=("parallel",),
        ),
    )(idx, tw0, w1t, b1_2d, ut)

    return out[:B]


def _reference(inputs, data_vectors, w0, w1, b1, u):
    """Pure-JAX f32 reference of the module forward pass (for sanity check)."""
    x = jnp.take(data_vectors, inputs, axis=0)
    h = jnp.tanh(jnp.einsum("bnd,hd->bnh", x, w0))
    h = jnp.tanh(jnp.einsum("bnh,gh->bng", h, w1) + b1)
    e = jnp.einsum("bnh,ph->bnp", h, u)
    s, o = e[:, 0:1, :], e[:, 1:, :]
    return -jnp.sqrt(jnp.sum((s - o) ** 2, axis=-1))


if __name__ == "__main__":
    # Small, deterministic synthetic configuration.
    total_node_num = 64     # embedding table rows
    vec_dim = 16            # data_vectors feature dim
    hidden_size = 32        # U_NN hidden size (hidden_layer_num = 2)
    parameter_num = 8       # U output dim
    B, N = 16, 8            # 16 examples -> 2 parallel grid steps of 8

    key = jax.random.PRNGKey(0)
    k_dv, k_w0, k_w1, k_b1, k_u, k_idx = jax.random.split(key, 6)

    data_vectors = jax.random.normal(k_dv, (total_node_num, vec_dim), jnp.float32)
    w0 = jax.random.uniform(k_w0, (hidden_size, vec_dim), jnp.float32, -0.3, 0.3)
    w1 = jax.random.uniform(k_w1, (hidden_size, hidden_size), jnp.float32, -0.3, 0.3)
    b1 = jax.random.uniform(k_b1, (hidden_size,), jnp.float32, -0.1, 0.1)
    u = jax.random.uniform(k_u, (parameter_num, hidden_size), jnp.float32, -0.3, 0.3)

    inputs = jax.random.randint(k_idx, (B, N), 0, total_node_num, jnp.int32)

    out = jax.block_until_ready(embedding_forward(inputs, data_vectors, w0, w1, b1, u))

    ref = _reference(inputs, data_vectors, w0, w1, b1, u)
    assert out.shape == (B, N - 1), out.shape
    # bf16 MXU inputs (fc1 / U) with f32 accumulation -> small drift vs f32 ref.
    assert jnp.allclose(out, ref, atol=5e-2, rtol=5e-2), (
        float(jnp.max(jnp.abs(out - ref))))

    print("KERNEL_OK")
</pallas_src>

<mosaic_0001>
module attributes {stable_mosaic.version = 11 : i64} {
  func.func @_embedding_kernel(%arg0: i32, %arg1: memref<64x1xi32, #tpu.memory_space<vmem>>, %arg2: memref<64x32xf32, #tpu.memory_space<vmem>>, %arg3: memref<32x32xbf16, #tpu.memory_space<vmem>>, %arg4: memref<1x32xf32, #tpu.memory_space<vmem>>, %arg5: memref<32x8xbf16, #tpu.memory_space<vmem>>, %arg6: memref<8x7xf32, #tpu.memory_space<vmem>>) attributes {dimension_semantics = [#tpu.dimension_semantics<parallel>], iteration_bounds = array<i64: 2>, scalar_prefetch = 0 : i64, scratch_operands = 0 : i64, tpu.core_type = #tpu.core_type<tc>, window_params = [{transform_indices = @transform_0, window_bounds = array<i64: 64, 1>}, {pipeline_mode = #tpu.pipeline_mode<synchronous>, transform_indices = @transform_1, window_bounds = array<i64: 64, 32>}, {pipeline_mode = #tpu.pipeline_mode<synchronous>, transform_indices = @transform_2, window_bounds = array<i64: 32, 32>}, {pipeline_mode = #tpu.pipeline_mode<synchronous>, transform_indices = @transform_3, window_bounds = array<i64: 1, 32>}, {pipeline_mode = #tpu.pipeline_mode<synchronous>, transform_indices = @transform_4, window_bounds = array<i64: 32, 8>}, {transform_indices = @transform_5, window_bounds = array<i64: 8, 7>}]} {
    %0 = tpu.iota {dimensions = array<i32: 1>} : vector<64x64xi32>
    %c0 = arith.constant 0 : index
    %c0_0 = arith.constant 0 : index
    %1 = vector.load %arg1[%c0, %c0_0] : memref<64x1xi32, #tpu.memory_space<vmem>>, vector<64x1xi32>
    %2 = vector.broadcast %1 : vector<64x1xi32> to vector<64x64xi32>
    %3 = arith.cmpi eq, %0, %2 : vector<64x64xi32>
    %cst = arith.constant 1.000000e+00 : f32
    %cst_1 = arith.constant 0.000000e+00 : f32
    %4 = vector.broadcast %cst : f32 to vector<64x64xf32>
    %5 = vector.broadcast %cst_1 : f32 to vector<64x64xf32>
    %6 = arith.select %3, %4, %5 : vector<64x64xi1>, vector<64x64xf32>
    %c0_2 = arith.constant 0 : index
    %c0_3 = arith.constant 0 : index
    %7 = vector.load %arg2[%c0_2, %c0_3] : memref<64x32xf32, #tpu.memory_space<vmem>>, vector<64x32xf32>
    %cst_4 = arith.constant dense<0.000000e+00> : vector<64x32xf32>
    %8 = tpu.matmul %6, %7, %cst_4 {dimension_numbers = #tpu.dot_dimension_numbers<[1], [0], [0], [1], [0, 0, 1, 1], [], []>} : vector<64x64xf32>, vector<64x32xf32>, vector<64x32xf32> -> vector<64x32xf32>
    %9 = math.tanh %8 : vector<64x32xf32>
    %10 = arith.truncf %9 : vector<64x32xf32> to vector<64x32xbf16>
    %c0_5 = arith.constant 0 : index
    %c0_6 = arith.constant 0 : index
    %11 = vector.load %arg3[%c0_5, %c0_6] : memref<32x32xbf16, #tpu.memory_space<vmem>>, vector<32x32xbf16>
    %cst_7 = arith.constant dense<0.000000e+00> : vector<64x32xf32>
    %12 = tpu.matmul %10, %11, %cst_7 {dimension_numbers = #tpu.dot_dimension_numbers<[1], [0], [0], [1], [0, 0, 1, 1], [], []>} : vector<64x32xbf16>, vector<32x32xbf16>, vector<64x32xf32> -> vector<64x32xf32>
    %c0_8 = arith.constant 0 : index
    %c0_9 = arith.constant 0 : index
    %13 = vector.load %arg4[%c0_8, %c0_9] : memref<1x32xf32, #tpu.memory_space<vmem>>, vector<1x32xf32>
    %14 = vector.broadcast %13 : vector<1x32xf32> to vector<64x32xf32>
    %15 = arith.addf %12, %14 : vector<64x32xf32>
    %16 = math.tanh %15 : vector<64x32xf32>
    %17 = arith.truncf %16 : vector<64x32xf32> to vector<64x32xbf16>
    %c0_10 = arith.constant 0 : index
    %c0_11 = arith.constant 0 : index
    %18 = vector.load %arg5[%c0_10, %c0_11] : memref<32x8xbf16, #tpu.memory_space<vmem>>, vector<32x8xbf16>
    %cst_12 = arith.constant dense<0.000000e+00> : vector<64x8xf32>
    %19 = tpu.matmul %17, %18, %cst_12 {dimension_numbers = #tpu.dot_dimension_numbers<[1], [0], [0], [1], [0, 0, 1, 1], [], []>} : vector<64x32xbf16>, vector<32x8xbf16>, vector<64x8xf32> -> vector<64x8xf32>
    %20 = vector.shape_cast %19 : vector<64x8xf32> to vector<8x8x8xf32>
    %21 = vector.extract_strided_slice %20 {offsets = [0, 0, 0], sizes = [8, 1, 8], strides = [1, 1, 1]} : vector<8x8x8xf32> to vector<8x1x8xf32>
    %22 = vector.extract_strided_slice %20 {offsets = [0, 1, 0], sizes = [8, 7, 8], strides = [1, 1, 1]} : vector<8x8x8xf32> to vector<8x7x8xf32>
    %23 = vector.broadcast %21 : vector<8x1x8xf32> to vector<8x7x8xf32>
    %24 = arith.subf %22, %23 : vector<8x7x8xf32>
    %25 = arith.mulf %24, %24 : vector<8x7x8xf32>
    %cst_13 = arith.constant dense<0.000000e+00> : vector<8x7xf32>
    %26 = vector.multi_reduction <add>, %25, %cst_13 [2] : vector<8x7x8xf32> to vector<8x7xf32>
    %27 = math.sqrt %26 : vector<8x7xf32>
    %cst_14 = arith.constant 0.000000e+00 : f32
    %28 = vector.broadcast %cst_14 : f32 to vector<8x7xf32>
    %29 = arith.subf %28, %27 : vector<8x7xf32>
    %c0_15 = arith.constant 0 : index
    %c0_16 = arith.constant 0 : index
    %30 = vector.load %arg6[%c0_15, %c0_16] : memref<8x7xf32, #tpu.memory_space<vmem>>, vector<8x7xf32>
    tpu.vector_store %arg6[%c0_15, %c0_16], %29 {strides = array<i32>} : memref<8x7xf32, #tpu.memory_space<vmem>>, vector<8x7xf32>,
    return
  }
  func.func @transform_0(%arg0: i32) -> (i32, i32) {
    %c0_i32 = arith.constant 0 : i32
    %c0_i32_0 = arith.constant 0 : i32
    return %arg0, %c0_i32 : i32, i32
  }
  func.func @transform_1(%arg0: i32) -> (i32, i32) {
    %c0_i32 = arith.constant 0 : i32
    %c0_i32_0 = arith.constant 0 : i32
    %c0_i32_1 = arith.constant 0 : i32
    return %c0_i32, %c0_i32_0 : i32, i32
  }
  func.func @transform_2(%arg0: i32) -> (i32, i32) {
    %c0_i32 = arith.constant 0 : i32
    %c0_i32_0 = arith.constant 0 : i32
    %c0_i32_1 = arith.constant 0 : i32
    return %c0_i32, %c0_i32_0 : i32, i32
  }
  func.func @transform_3(%arg0: i32) -> (i32, i32) {
    %c0_i32 = arith.constant 0 : i32
    %c0_i32_0 = arith.constant 0 : i32
    %c0_i32_1 = arith.constant 0 : i32
    return %c0_i32, %c0_i32_0 : i32, i32
  }
  func.func @transform_4(%arg0: i32) -> (i32, i32) {
    %c0_i32 = arith.constant 0 : i32
    %c0_i32_0 = arith.constant 0 : i32
    %c0_i32_1 = arith.constant 0 : i32
    return %c0_i32, %c0_i32_0 : i32, i32
  }
  func.func @transform_5(%arg0: i32) -> (i32, i32) {
    %c0_i32 = arith.constant 0 : i32
    %c0_i32_0 = arith.constant 0 : i32
    return %arg0, %c0_i32 : i32, i32
  }
}

</mosaic_0001>

<llo_original>
// kernel: tpu_custom_call.1
$region0: #{tpu_custom_call.1}
  #allocation0 [shape = 'u32[]', space=smem, size = 0x4, offset = 0x4, fixed_abs, tag = 'smem constant byte address 0x4 - core index']
  #allocation1 [shape = 'u32[144,128]{1,0:T(1,128)}', space=vmem, size = 0x12000, scoped, tag = 'internal scratch']
  %s0 = inlined_call_operand.vmem [shape: s32[128,1], index: 0, kind: input, shape index: {}]
  %s1 = inlined_call_operand.vmem [shape: f32[64,32], index: 1, kind: input, shape index: {}]
  %s2 = inlined_call_operand.vmem [shape: bf16[32,32], index: 2, kind: input, shape index: {}]
  %s3 = inlined_call_operand.vmem [shape: f32[1,32], index: 3, kind: input, shape index: {}]
  %s4 = inlined_call_operand.vmem [shape: bf16[32,8], index: 4, kind: input, shape index: {}]
  %s5 = inlined_call_operand.vmem [shape: f32[16,7], index: 5, kind: output, shape index: {}]
  %s6 = sld [smem:[#allocation0]]
  $region53: #{tpu_custom_call.1} parent=0
    _
  %s8 = ssub.s32 1, %s6
  %s9 = scalar_select 0, %s8, %s6
  loop: start=0, step=1, limit=4
  $region2: #{tpu_custom_call.1} parent=0 // loop_pre_header
    _
  $region3: #{tpu_custom_call.1} parent=0 // loop_header
    %s11 = sphi 0, %s15
    %p12 = scmp.ge.s32.totalorder %s11, 4
    %s21 = sphi 0, %s23
    %s24 = sphi 0, %s21
    %s25 = sphi 0, %s24
    %s41 = sphi 0, %s25
    %s45 = sphi 0, %s45
    %s47 = sphi 0, %s45
    %s48 = sphi 0, %s47
    %s62 = sphi 0, %s48
    %s66 = sphi 0, %s66
    %s68 = sphi 0, %s66
    %s69 = sphi 0, %s68
    %s83 = sphi 0, %s69
    %s87 = sphi 0, %s87
    %s89 = sphi 0, %s87
    %s90 = sphi 0, %s89
    %s104 = sphi 0, %s90
    %s108 = sphi 0, %s108
    %s110 = sphi 0, %s108
    %s111 = sphi 0, %s110
    %s125 = sphi 0, %s111
    %s131 = sphi 0, %s133
    %s134 = sphi 0, %s131
    %s135 = sphi 0, %s134
    %s151 = sphi 0, %s135
  $region4: #{tpu_custom_call.1} parent=0 // loop_header_branch
    %14 = sbr.rel (%p12) target = $region8
  $region5: #{tpu_custom_call.1} parent=0 // loop_body
    %s16 = ssub.s32 %s11, 1
    %s17 = ssub.s32 %s11, 2
    %s18 = sadd.s32 %s11, 1
    %s19 = ssub.s32 %s11, %s18
    %p20 = scmp.eq.s32.totalorder %s19, 0
    %s22 = sadd.s32 %s21, 1
    %s23 = scalar_select %p20, %s21, %s22
    %p26 = pneg %p20
    %p27 = scmp.eq.s32.totalorder %s11, 1
    %p28 = por %p26, %p27
    %p29 = scmp.ne.s32.totalorder %s21, %s24
    %p30 = scmp.eq.s32.totalorder %s11, 0
    %p31 = por %p29, %p30
    %p32 = scmp.ne.s32.totalorder %s21, %s24
    %p33 = scmp.eq.s32.totalorder %s16, 1
    %p34 = por %p32, %p33
    %p35 = scmp.ne.s32.totalorder %s24, %s25
    %p36 = scmp.eq.s32.totalorder %s16, 0
    %p37 = por %p35, %p36
    %p38 = scmp.ne.s32.totalorder %s24, %s25
    %p39 = scmp.eq.s32.totalorder %s17, 1
    %p40 = por %p38, %p39
    %p42 = scmp.ne.s32.totalorder %s25, %s41
    %p43 = scmp.eq.s32.totalorder %s17, 0
    %p44 = por %p42, %p43
    %s46 = sadd.s32 %s45, 1
    %p49 = scmp.eq.s32.totalorder %s11, 1
    %p50 = scmp.ne.s32.totalorder %s45, %s47
    %p51 = scmp.eq.s32.totalorder %s11, 0
    %p52 = por %p50, %p51
    %p53 = scmp.ne.s32.totalorder %s45, %s47
    %p54 = scmp.eq.s32.totalorder %s16, 1
    %p55 = por %p53, %p54
    %p56 = scmp.ne.s32.totalorder %s47, %s48
    %p57 = scmp.eq.s32.totalorder %s16, 0
    %p58 = por %p56, %p57
    %p59 = scmp.ne.s32.totalorder %s47, %s48
    %p60 = scmp.eq.s32.totalorder %s17, 1
    %p61 = por %p59, %p60
    %p63 = scmp.ne.s32.totalorder %s48, %s62
    %p64 = scmp.eq.s32.totalorder %s17, 0
    %p65 = por %p63, %p64
    %s67 = sadd.s32 %s66, 1
    %p70 = scmp.eq.s32.totalorder %s11, 1
    %p71 = scmp.ne.s32.totalorder %s66, %s68
    %p72 = scmp.eq.s32.totalorder %s11, 0
    %p73 = por %p71, %p72
    %p74 = scmp.ne.s32.totalorder %s66, %s68
    %p75 = scmp.eq.s32.totalorder %s16, 1
    %p76 = por %p74, %p75
    %p77 = scmp.ne.s32.totalorder %s68, %s69
    %p78 = scmp.eq.s32.totalorder %s16, 0
    %p79 = por %p77, %p78
    %p80 = scmp.ne.s32.totalorder %s68, %s69
    %p81 = scmp.eq.s32.totalorder %s17, 1
    %p82 = por %p80, %p81
    %p84 = scmp.ne.s32.totalorder %s69, %s83
    %p85 = scmp.eq.s32.totalorder %s17, 0
    %p86 = por %p84, %p85
    %s88 = sadd.s32 %s87, 1
    %p91 = scmp.eq.s32.totalorder %s11, 1
    %p92 = scmp.ne.s32.totalorder %s87, %s89
    %p93 = scmp.eq.s32.totalorder %s11, 0
    %p94 = por %p92, %p93
    %p95 = scmp.ne.s32.totalorder %s87, %s89
    %p96 = scmp.eq.s32.totalorder %s16, 1
    %p97 = por %p95, %p96
    %p98 = scmp.ne.s32.totalorder %s89, %s90
    %p99 = scmp.eq.s32.totalorder %s16, 0
    %p100 = por %p98, %p99
    %p101 = scmp.ne.s32.totalorder %s89, %s90
    %p102 = scmp.eq.s32.totalorder %s17, 1
    %p103 = por %p101, %p102
    %p105 = scmp.ne.s32.totalorder %s90, %s104
    %p106 = scmp.eq.s32.totalorder %s17, 0
    %p107 = por %p105, %p106
    %s109 = sadd.s32 %s108, 1
    %p112 = scmp.eq.s32.totalorder %s11, 1
    %p113 = scmp.ne.s32.totalorder %s108, %s110
    %p114 = scmp.eq.s32.totalorder %s11, 0
    %p115 = por %p113, %p114
    %p116 = scmp.ne.s32.totalorder %s108, %s110
    %p117 = scmp.eq.s32.totalorder %s16, 1
    %p118 = por %p116, %p117
    %p119 = scmp.ne.s32.totalorder %s110, %s111
    %p120 = scmp.eq.s32.totalorder %s16, 0
    %p121 = por %p119, %p120
    %p122 = scmp.ne.s32.totalorder %s110, %s111
    %p123 = scmp.eq.s32.totalorder %s17, 1
    %p124 = por %p122, %p123
    %p126 = scmp.ne.s32.totalorder %s111, %s125
    %p127 = scmp.eq.s32.totalorder %s17, 0
    %p128 = por %p126, %p127
    %s129 = ssub.s32 %s11, %s18
    %p130 = scmp.eq.s32.totalorder %s129, 0
    %s132 = sadd.s32 %s131, 1
    %s133 = scalar_select %p130, %s131, %s132
    %p136 = pneg %p130
    %p137 = scmp.eq.s32.totalorder %s11, 1
    %p138 = por %p136, %p137
    %p139 = scmp.ne.s32.totalorder %s131, %s134
    %p140 = scmp.eq.s32.totalorder %s11, 0
    %p141 = por %p139, %p140
    %p142 = scmp.ne.s32.totalorder %s131, %s134
    %p143 = scmp.eq.s32.totalorder %s16, 1
    %p144 = por %p142, %p143
    %p145 = scmp.ne.s32.totalorder %s134, %s135
    %p146 = scmp.eq.s32.totalorder %s16, 0
    %p147 = por %p145, %p146
    %p148 = scmp.ne.s32.totalorder %s134, %s135
    %p149 = scmp.eq.s32.totalorder %s17, 1
    %p150 = por %p148, %p149
    %p152 = scmp.ne.s32.totalorder %s135, %s151
    %p153 = scmp.eq.s32.totalorder %s17, 0
    %p154 = por %p152, %p153
    %p155 = scmp.le.s32.totalorder 1, %s11
    %p156 = scmp.lt.s32.totalorder %s11, 3
    %p157 = pnand %p155, %p156
    %p158 = pneg %p157
    // Predicated region
    $region9: #{tpu_custom_call.1} parent=5 // pred_check
      _
    $region10: #{tpu_custom_call.1} parent=5 // pred_check_branch
      %160 = sbr.rel (%p157) target = $region12
    $region11: #{tpu_custom_call.1} parent=5 // pred_region
      %s161 = ssub.s32 %s11, 1
      // Predicated region
      $region13: #{tpu_custom_call.1} parent=11 // pred_check
        %p162 = pneg %p58
      $region14: #{tpu_custom_call.1} parent=11 // pred_check_branch
        %164 = sbr.rel (%p162) target = $region16
      $region15: #{tpu_custom_call.1} parent=11 // pred_region
        _
      $region16: #{tpu_custom_call.1} parent=11 // pred_fallthru
        _
      // Predicated region
      $region17: #{tpu_custom_call.1} parent=11 // pred_check
        %p165 = pneg %p79
      $region18: #{tpu_custom_call.1} parent=11 // pred_check_branch
        %167 = sbr.rel (%p165) target = $region20
      $region19: #{tpu_custom_call.1} parent=11 // pred_region
        _
      $region20: #{tpu_custom_call.1} parent=11 // pred_fallthru
        _
      // Predicated region
      $region21: #{tpu_custom_call.1} parent=11 // pred_check
        %p168 = pneg %p100
      $region22: #{tpu_custom_call.1} parent=11 // pred_check_branch
        %170 = sbr.rel (%p168) target = $region24
      $region23: #{tpu_custom_call.1} parent=11 // pred_region
        _
      $region24: #{tpu_custom_call.1} parent=11 // pred_fallthru
        _
      // Predicated region
      $region25: #{tpu_custom_call.1} parent=11 // pred_check
        %p171 = pneg %p121
      $region26: #{tpu_custom_call.1} parent=11 // pred_check_branch
        %173 = sbr.rel (%p171) target = $region28
      $region27: #{tpu_custom_call.1} parent=11 // pred_region
        _
      $region28: #{tpu_custom_call.1} parent=11 // pred_fallthru
        _
    $region12: #{tpu_custom_call.1} parent=5 // pred_fallthru
      _
    %p174 = scmp.lt.s32.totalorder %s11, 2
    // Predicated region
    $region29: #{tpu_custom_call.1} parent=5 // pred_check
      %p175 = pneg %p174
    $region30: #{tpu_custom_call.1} parent=5 // pred_check_branch
      %177 = sbr.rel (%p175) target = $region32
    $region31: #{tpu_custom_call.1} parent=5 // pred_region
      // Predicated region
      $region33: #{tpu_custom_call.1} parent=31 // pred_check
        %p178 = pneg %p31
      $region34: #{tpu_custom_call.1} parent=31 // pred_check_branch
        %180 = sbr.rel (%p178) target = $region36
      $region35: #{tpu_custom_call.1} parent=31 // pred_region
        %s181 = smul.u32 8, %s11
        %p182 = scmp.lt.s32.totalorder %s181, 15
        %s183 = scalar_select %p182, %s181, 15
        %s184 = smul.addr %s183, 8
        %s185 = scalar_lea.vmem %s0, %s184
        %s186 = smul.u32 8, %s11
      $region36: #{tpu_custom_call.1} parent=31 // pred_fallthru
        _
    $region32: #{tpu_custom_call.1} parent=5 // pred_fallthru
      _
    %p187 = scmp.le.s32.totalorder 1, %s11
    %p188 = scmp.lt.s32.totalorder %s11, 3
    %p189 = pnand %p187, %p188
    %p190 = pneg %p189
    // Predicated region
    $region37: #{tpu_custom_call.1} parent=5 // pred_check
      _
    $region38: #{tpu_custom_call.1} parent=5 // pred_check_branch
      %192 = sbr.rel (%p189) target = $region40
    $region39: #{tpu_custom_call.1} parent=5 // pred_region
      %s193 = ssub.s32 %s11, 1
      %s194 = smul.u32 8, %s16
      %p195 = scmp.lt.s32.totalorder %s194, 15
      %s196 = scalar_select %p195, %s194, 15
      %s197 = smul.addr %s196, 8
      %s198 = scalar_lea.vmem %s0, %s197
      %p199 = pneg %p37
      %p200 = pneg %p34
      %p201 = pneg %p58
      %p202 = pneg %p55
      %p203 = pneg %p79
      %p204 = pneg %p76
      %p205 = pneg %p100
      %p206 = pneg %p97
      %p207 = pneg %p121
      %p208 = pneg %p118
      %p209 = pneg %p147
      %p210 = pneg %p144
      %p211 = scmp.lt.s32.totalorder %s16, 1
      %s212 = scalar_select %p211, %s16, 1
      %s213 = smul.addr %s212, 8
      %s214 = scalar_lea.vmem %s5, %s213
      %s215 = smul.u32 8, %s16
      %p216 = scmp.lt.s32.totalorder %s215, 15
      %s217 = scalar_select %p216, %s215, 15
      %s218 = smul.addr %s217, 8
      %s219 = scalar_lea.vmem %s0, %s218
      %s220 = smul.u32 8, %s16
      %p221 = scmp.lt.s32.totalorder %s16, 1
      %s222 = scalar_select %p221, %s16, 1
      %s223 = smul.addr %s222, 8
      %s224 = scalar_lea.vmem %s5, %s223
      %v226 = vlaneseq
      %v227 = vand.u32 %v226, 127
      %v228 = vld [vmem:[%s219] sm:$0xff]
      %v229 = vld [vmem:[%s219 + $0x8] sm:$0xff]
      %v230 = vld [vmem:[%s219 + $0x10] sm:$0xff]
      %v231 = vld [vmem:[%s219 + $0x18] sm:$0xff]
      %v232 = vld [vmem:[%s219 + $0x20] sm:$0xff]
      %v233 = vld [vmem:[%s219 + $0x28] sm:$0xff]
      %v234 = vld [vmem:[%s219 + $0x30] sm:$0xff]
      %v235 = vld [vmem:[%s219 + $0x38] sm:$0xff]
      %236 = vset.pattern.permute.xlu0 0
      %237 = vperm.xlu0 %236, %v228
      %v238 = vpop.permute.xlu0 %237
      %239 = vset.pattern.permute.xlu0 0
      %240 = vperm.xlu0 %239, %v229
      %v241 = vpop.permute.xlu0 %240
      %242 = vset.pattern.permute.xlu0 0
      %243 = vperm.xlu0 %242, %v230
      %v244 = vpop.permute.xlu0 %243
      %245 = vset.pattern.permute.xlu0 0
      %246 = vperm.xlu0 %245, %v231
      %v247 = vpop.permute.xlu0 %246
      %248 = vset.pattern.permute.xlu0 0
      %249 = vperm.xlu0 %248, %v232
      %v250 = vpop.permute.xlu0 %249
      %251 = vset.pattern.permute.xlu0 0
      %252 = vperm.xlu0 %251, %v233
      %v253 = vpop.permute.xlu0 %252
      %254 = vset.pattern.permute.xlu0 0
      %255 = vperm.xlu0 %254, %v234
      %v256 = vpop.permute.xlu0 %255
      %257 = vset.pattern.permute.xlu0 0
      %258 = vperm.xlu0 %257, %v235
      %v259 = vpop.permute.xlu0 %258
      %vm260 = vcmp.eq.s32.totalorder %v227, %v238
      %vm261 = vcmp.eq.s32.totalorder %v227, %v241
      %vm262 = vcmp.eq.s32.totalorder %v227, %v244
      %vm263 = vcmp.eq.s32.totalorder %v227, %v247
      %vm264 = vcmp.eq.s32.totalorder %v227, %v250
      %vm265 = vcmp.eq.s32.totalorder %v227, %v253
      %vm266 = vcmp.eq.s32.totalorder %v227, %v256
      %vm267 = vcmp.eq.s32.totalorder %v227, %v259
      %v268 = vsel %vm260, 1.0, 0.0
      %v269 = vsel %vm261, 1.0, 0.0
      %v270 = vsel %vm262, 1.0, 0.0
      %v271 = vsel %vm263, 1.0, 0.0
      %v272 = vsel %vm264, 1.0, 0.0
      %v273 = vsel %vm265, 1.0, 0.0
      %v274 = vsel %vm266, 1.0, 0.0
      %v275 = vsel %vm267, 1.0, 0.0
      %v276 = vld [vmem:[%s1] sm:$0xff]
      %v277 = vld [vmem:[%s1 + $0x8] sm:$0xff]
      %v278 = vld [vmem:[%s1 + $0x10] sm:$0xff]
      %v279 = vld [vmem:[%s1 + $0x18] sm:$0xff]
      %v280 = vld [vmem:[%s1 + $0x20] sm:$0xff]
      %v281 = vld [vmem:[%s1 + $0x28] sm:$0xff]
      %v282 = vld [vmem:[%s1 + $0x30] sm:$0xff]
      %v283 = vld [vmem:[%s1 + $0x38] sm:$0xff]
      %vm284 = vcmask 523264
      %v286 = vsel %vm284, %v268, 0
      %v289 = vsel %vm284, %v269, 0
      %v292 = vsel %vm284, %v270, 0
      %v295 = vsel %vm284, %v271, 0
      %v298 = vsel %vm284, %v272, 0
      %v301 = vsel %vm284, %v273, 0
      %v304 = vsel %vm284, %v274, 0
      %v307 = vsel %vm284, %v275, 0
      %309 = vmatprep.subr.mxu0 0.0
      %310 = vmatpush1.msra.mxu0 0.0
      %311 = vmatprep.subr.mxu0 0.0
      %312 = vmatpush1.msra.mxu0 0.0
      %313 = vmatprep.subr.mxu0 0.0
      %314 = vmatpush1.msra.mxu0 0.0
      %315 = vmatprep.subr.mxu0 0.0
      %316 = vmatpush1.msra.mxu0 0.0
      %317 = vmatprep.subr.mxu0 0.0
      %318 = vmatpush1.msra.mxu0 0.0
      %319 = vmatprep.subr.mxu0 0.0
      %320 = vmatpush1.msra.mxu0 0.0
      %321 = vmatprep.subr.mxu0 0.0
      %322 = vmatpush1.msra.mxu0 0.0
      %323 = vmatprep.subr.mxu0 0.0
      %324 = vmatpush1.msra.mxu0 0.0
      %325 = vmatprep.subr.mxu0 0.0
      %326 = vmatpush1.msra.mxu0 %v283
      %327 = vmatprep.subr.mxu0 0.0
      %328 = vmatpush1.msra.mxu0 %v282
      %329 = vmatprep.subr.mxu0 0.0
      %330 = vmatpush1.msra.mxu0 %v281
      %331 = vmatprep.subr.mxu0 0.0
      %332 = vmatpush1.msra.mxu0 %v280
      %333 = vmatprep.subr.mxu0 0.0
      %334 = vmatpush1.msra.mxu0 %v279
      %335 = vmatprep.subr.mxu0 0.0
      %336 = vmatpush1.msra.mxu0 %v278
      %337 = vmatprep.subr.mxu0 0.0
      %338 = vmatpush1.msra.mxu0 %v277
      %339 = vmatprep.subr.mxu0 0.0
      %340 = vmatpush1.msra.mxu0 %v276
      %341 = vmatprep.subr.mxu0 0.0
      %342 = vmatpush2.msra.mxu0 0.0
      %343 = vmatprep.subr.mxu0 0.0
      %344 = vmatpush2.msra.mxu0 0.0
      %345 = vmatprep.subr.mxu0 0.0
      %346 = vmatpush2.msra.mxu0 0.0
      %347 = vmatprep.subr.mxu0 0.0
      %348 = vmatpush2.msra.mxu0 0.0
      %349 = vmatprep.subr.mxu0 0.0
      %350 = vmatpush2.msra.mxu0 0.0
      %351 = vmatprep.subr.mxu0 0.0
      %352 = vmatpush2.msra.mxu0 0.0
      %353 = vmatprep.subr.mxu0 0.0
      %354 = vmatpush2.msra.mxu0 0.0
      %355 = vmatprep.subr.mxu0 0.0
      %356 = vmatpush2.msra.mxu0 0.0
      %357 = vmatprep.subr.mxu0 0.0
      %358 = vmatpush2.msra.mxu0 0.0
      %359 = vmatprep.subr.mxu0 0.0
      %360 = vmatpush2.msra.mxu0 0.0
      %361 = vmatprep.subr.mxu0 0.0
      %362 = vmatpush2.msra.mxu0 0.0
      %363 = vmatprep.subr.mxu0 0.0
      %364 = vmatpush2.msra.mxu0 0.0
      %365 = vmatprep.subr.mxu0 0.0
      %366 = vmatpush2.msra.mxu0 0.0
      %367 = vmatprep.subr.mxu0 0.0
      %368 = vmatpush2.msra.mxu0 0.0
      %369 = vmatprep.subr.mxu0 0.0
      %370 = vmatpush2.msra.mxu0 0.0
      %371 = vmatprep.subr.mxu0 0.0
      %372 = vmatpush2.msra.mxu0 0.0
      %373 = vmatprep.mubr.f32.mxu0 0.0
      %374 = vmatmul.mubr.f32.gmra.mxu0 %v286
      %v375 = vpop.f32.mrf.mxu0
      %v376 = vadd.f32 0.0, %v375
      %v377 = vpop.f32.mrf.mxu0
      %378 = vmatprep.mubr.f32.mxu0 0.0
      %379 = vmatmul.mubr.f32.gmra.mxu0 %v289
      %v380 = vpop.f32.mrf.mxu0
      %v381 = vadd.f32 0.0, %v380
      %v382 = vpop.f32.mrf.mxu0
      %383 = vmatprep.mubr.f32.mxu0 0.0
      %384 = vmatmul.mubr.f32.gmra.mxu0 %v292
      %v385 = vpop.f32.mrf.mxu0
      %v386 = vadd.f32 0.0, %v385
      %v387 = vpop.f32.mrf.mxu0
      %388 = vmatprep.mubr.f32.mxu0 0.0
      %389 = vmatmul.mubr.f32.gmra.mxu0 %v295
      %v390 = vpop.f32.mrf.mxu0
      %v391 = vadd.f32 0.0, %v390
      %v392 = vpop.f32.mrf.mxu0
      %393 = vmatprep.mubr.f32.mxu0 0.0
      %394 = vmatmul.mubr.f32.gmra.mxu0 %v298
      %v395 = vpop.f32.mrf.mxu0
      %v396 = vadd.f32 0.0, %v395
      %v397 = vpop.f32.mrf.mxu0
      %398 = vmatprep.mubr.f32.mxu0 0.0
      %399 = vmatmul.mubr.f32.gmra.mxu0 %v301
      %v400 = vpop.f32.mrf.mxu0
      %v401 = vadd.f32 0.0, %v400
      %v402 = vpop.f32.mrf.mxu0
      %403 = vmatprep.mubr.f32.mxu0 0.0
      %404 = vmatmul.mubr.f32.gmra.mxu0 %v304
      %v405 = vpop.f32.mrf.mxu0
      %v406 = vadd.f32 0.0, %v405
      %v407 = vpop.f32.mrf.mxu0
      %408 = vmatprep.mubr.f32.mxu0 0.0
      %409 = vmatmul.mubr.f32.gmra.mxu0 %v307
      %v410 = vpop.f32.mrf.mxu0
      %v411 = vadd.f32 0.0, %v410
      %v412 = vpop.f32.mrf.mxu0
      %413 = vdwg.mxu0
      %v414 = vtanh.pop %v376
      %v415 = vtanh.pop %v381
      %v416 = vtanh.pop %v386
      %v417 = vtanh.pop %v391
      %v418 = vtanh.pop %v396
      %v419 = vtanh.pop %v401
      %v420 = vtanh.pop %v406
      %v421 = vtanh.pop %v411
      %v422 = vpack.c.bf16 %v415, %v414
      %v423 = vpack.c.bf16 %v417, %v416
      %v424 = vpack.c.bf16 %v419, %v418
      %v425 = vpack.c.bf16 %v421, %v420
      %v426 = vld [vmem:[%s2] sm:$0xf]
      %v427 = vld [vmem:[%s2 + $0x4] sm:$0xf]
      %v428 = vld [vmem:[%s2 + $0x8] sm:$0xf]
      %v429 = vld [vmem:[%s2 + $0xc] sm:$0xf]
      %v430 = vld [vmem:[%s3] sm:$0x1]
      %v432 = vlaneseq
      %v433 = vshrl.u32 %v432, 7
      %v434 = vsub.s32 0, %v433
      %v435 = vrot.slane %v430, %v434
      %v441 = vunpack.c.l.b16 %v426
      %v442 = vunpack.c.l.b16 %v427
      %v443 = vunpack.c.l.b16 %v428
      %v444 = vunpack.c.l.b16 %v429
      %v445 = vpack.c.b16 %v442, %v441
      %v446 = vpack.c.b16 %v444, %v443
      %vm449 = vcmask 261120
      %v451 = vsel %vm449, %v422, 0
      %v454 = vsel %vm449, %v423, 0
      %v457 = vsel %vm449, %v424, 0
      %v460 = vsel %vm449, %v425, 0
      %462 = vmatprep.subr.bf16.mxu0 0
      %463 = vmatpush1.bf16.msra.mxu0 0
      %464 = vmatprep.subr.bf16.mxu0 0
      %465 = vmatpush1.bf16.msra.mxu0 0
      %466 = vmatprep.subr.bf16.mxu0 0
      %467 = vmatpush1.bf16.msra.mxu0 0
      %468 = vmatprep.subr.bf16.mxu0 0
      %469 = vmatpush1.bf16.msra.mxu0 0
      %470 = vmatprep.subr.bf16.mxu0 0
      %471 = vmatpush1.bf16.msra.mxu0 0
      %472 = vmatprep.subr.bf16.mxu0 0
      %473 = vmatpush1.bf16.msra.mxu0 0
      %474 = vmatprep.subr.bf16.mxu0 0
      %475 = vmatpush1.bf16.msra.mxu0 %v446
      %476 = vmatprep.subr.bf16.mxu0 0
      %477 = vmatpush1.bf16.msra.mxu0 %v445
      %478 = vmatprep.subr.bf16.mxu0 0
      %479 = vmatpush2.bf16.msra.mxu0 0
      %480 = vmatprep.subr.bf16.mxu0 0
      %481 = vmatpush2.bf16.msra.mxu0 0
      %482 = vmatprep.subr.bf16.mxu0 0
      %483 = vmatpush2.bf16.msra.mxu0 0
      %484 = vmatprep.subr.bf16.mxu0 0
      %485 = vmatpush2.bf16.msra.mxu0 0
      %486 = vmatprep.subr.bf16.mxu0 0
      %487 = vmatpush2.bf16.msra.mxu0 0
      %488 = vmatprep.subr.bf16.mxu0 0
      %489 = vmatpush2.bf16.msra.mxu0 0
      %490 = vmatprep.subr.bf16.mxu0 0
      %491 = vmatpush2.bf16.msra.mxu0 0
      %492 = vmatprep.subr.bf16.mxu0 0
      %493 = vmatpush2.bf16.msra.mxu0 0
      %494 = vmatprep.mubr.bf16.mxu0 0
      %495 = vmatmul.mubr.bf16.gmra.mxu0 %v451
      %v496 = vpop.f32.mrf.mxu0
      %v497 = vadd.f32 %v435, %v496
      %v498 = vpop.f32.mrf.mxu0
      %v499 = vpop.f32.mrf.mxu0
      %v500 = vadd.f32 %v435, %v499
      %v501 = vpop.f32.mrf.mxu0
      %502 = vmatprep.mubr.bf16.mxu0 0
      %503 = vmatmul.mubr.bf16.gmra.mxu0 %v454
      %v504 = vpop.f32.mrf.mxu0
      %v505 = vadd.f32 %v435, %v504
      %v506 = vpop.f32.mrf.mxu0
      %v507 = vpop.f32.mrf.mxu0
      %v508 = vadd.f32 %v435, %v507
      %v509 = vpop.f32.mrf.mxu0
      %510 = vmatprep.mubr.bf16.mxu0 0
      %511 = vmatmul.mubr.bf16.gmra.mxu0 %v457
      %v512 = vpop.f32.mrf.mxu0
      %v513 = vadd.f32 %v435, %v512
      %v514 = vpop.f32.mrf.mxu0
      %v515 = vpop.f32.mrf.mxu0
      %v516 = vadd.f32 %v435, %v515
      %v517 = vpop.f32.mrf.mxu0
      %518 = vmatprep.mubr.bf16.mxu0 0
      %519 = vmatmul.mubr.bf16.gmra.mxu0 %v460
      %v520 = vpop.f32.mrf.mxu0
      %v521 = vadd.f32 %v435, %v520
      %v522 = vpop.f32.mrf.mxu0
      %v523 = vpop.f32.mrf.mxu0
      %v524 = vadd.f32 %v435, %v523
      %v525 = vpop.f32.mrf.mxu0
      %526 = vdwg.mxu0
      %v527 = vtanh.pop %v497
      %v528 = vtanh.pop %v500
      %v529 = vtanh.pop %v505
      %v530 = vtanh.pop %v508
      %v531 = vtanh.pop %v513
      %v532 = vtanh.pop %v516
      %v533 = vtanh.pop %v521
      %v534 = vtanh.pop %v524
      %v535 = vpack.c.bf16 %v528, %v527
      %v536 = vpack.c.bf16 %v530, %v529
      %v537 = vpack.c.bf16 %v532, %v531
      %v538 = vpack.c.bf16 %v534, %v533
      %v539 = vld [vmem:[%s4] sm:$0xf]
      %v540 = vld [vmem:[%s4 + $0x4] sm:$0xf]
      %v541 = vld [vmem:[%s4 + $0x8] sm:$0xf]
      %v542 = vld [vmem:[%s4 + $0xc] sm:$0xf]
      %v547 = vunpack.c.l.b16 %v539
      %v548 = vunpack.c.l.b16 %v540
      %v549 = vunpack.c.l.b16 %v541
      %v550 = vunpack.c.l.b16 %v542
      %v551 = vpack.c.b16 %v548, %v547
      %v552 = vpack.c.b16 %v550, %v549
      %v556 = vsel %vm449, %v535, 0
      %v559 = vsel %vm449, %v536, 0
      %v562 = vsel %vm449, %v537, 0
      %v565 = vsel %vm449, %v538, 0
      %567 = vmatprep.subr.bf16.mxu0 0
      %568 = vmatpush1.bf16.msra.mxu0 0
      %569 = vmatprep.subr.bf16.mxu0 0
      %570 = vmatpush1.bf16.msra.mxu0 0
      %571 = vmatprep.subr.bf16.mxu0 0
      %572 = vmatpush1.bf16.msra.mxu0 0
      %573 = vmatprep.subr.bf16.mxu0 0
      %574 = vmatpush1.bf16.msra.mxu0 0
      %575 = vmatprep.subr.bf16.mxu0 0
      %576 = vmatpush1.bf16.msra.mxu0 0
      %577 = vmatprep.subr.bf16.mxu0 0
      %578 = vmatpush1.bf16.msra.mxu0 0
      %579 = vmatprep.subr.bf16.mxu0 0
      %580 = vmatpush1.bf16.msra.mxu0 %v552
      %581 = vmatprep.subr.bf16.mxu0 0
      %582 = vmatpush1.bf16.msra.mxu0 %v551
      %583 = vmatprep.subr.bf16.mxu0 0
      %584 = vmatpush2.bf16.msra.mxu0 0
      %585 = vmatprep.subr.bf16.mxu0 0
      %586 = vmatpush2.bf16.msra.mxu0 0
      %587 = vmatprep.subr.bf16.mxu0 0
      %588 = vmatpush2.bf16.msra.mxu0 0
      %589 = vmatprep.subr.bf16.mxu0 0
      %590 = vmatpush2.bf16.msra.mxu0 0
      %591 = vmatprep.subr.bf16.mxu0 0
      %592 = vmatpush2.bf16.msra.mxu0 0
      %593 = vmatprep.subr.bf16.mxu0 0
      %594 = vmatpush2.bf16.msra.mxu0 0
      %595 = vmatprep.subr.bf16.mxu0 0
      %596 = vmatpush2.bf16.msra.mxu0 0
      %597 = vmatprep.subr.bf16.mxu0 0
      %598 = vmatpush2.bf16.msra.mxu0 0
      %599 = vmatprep.mubr.bf16.mxu0 0
      %600 = vmatmul.mubr.bf16.gmra.mxu0 %v556
      %v601 = vpop.f32.mrf.mxu0
      %v602 = vadd.f32 0.0, %v601
      %v603 = vpop.f32.mrf.mxu0
      %v604 = vpop.f32.mrf.mxu0
      %v605 = vadd.f32 0.0, %v604
      %v606 = vpop.f32.mrf.mxu0
      %607 = vmatprep.mubr.bf16.mxu0 0
      %608 = vmatmul.mubr.bf16.gmra.mxu0 %v559
      %v609 = vpop.f32.mrf.mxu0
      %v610 = vadd.f32 0.0, %v609
      %v611 = vpop.f32.mrf.mxu0
      %v612 = vpop.f32.mrf.mxu0
      %v613 = vadd.f32 0.0, %v612
      %v614 = vpop.f32.mrf.mxu0
      %615 = vmatprep.mubr.bf16.mxu0 0
      %616 = vmatmul.mubr.bf16.gmra.mxu0 %v562
      %v617 = vpop.f32.mrf.mxu0
      %v618 = vadd.f32 0.0, %v617
      %v619 = vpop.f32.mrf.mxu0
      %v620 = vpop.f32.mrf.mxu0
      %v621 = vadd.f32 0.0, %v620
      %v622 = vpop.f32.mrf.mxu0
      %623 = vmatprep.mubr.bf16.mxu0 0
      %624 = vmatmul.mubr.bf16.gmra.mxu0 %v565
      %v625 = vpop.f32.mrf.mxu0
      %v626 = vadd.f32 0.0, %v625
      %v627 = vpop.f32.mrf.mxu0
      %v628 = vpop.f32.mrf.mxu0
      %v629 = vadd.f32 0.0, %v628
      %v630 = vpop.f32.mrf.mxu0
      %631 = vdwg.mxu0
      %v632 = vlaneseq
      %v633 = vshrl.u32 %v632, 7
      %v634 = vsub.s32 0, %v633
      %v635 = vrot.slane %v602, %v634
      %v636 = vlaneseq
      %v637 = vshrl.u32 %v636, 7
      %v638 = vsub.s32 0, %v637
      %v639 = vrot.slane %v605, %v638
      %v640 = vlaneseq
      %v641 = vshrl.u32 %v640, 7
      %v642 = vsub.s32 0, %v641
      %v643 = vrot.slane %v610, %v642
      %v644 = vlaneseq
      %v645 = vshrl.u32 %v644, 7
      %v646 = vsub.s32 0, %v645
      %v647 = vrot.slane %v613, %v646
      %v648 = vlaneseq
      %v649 = vshrl.u32 %v648, 7
      %v650 = vsub.s32 0, %v649
      %v651 = vrot.slane %v618, %v650
      %v652 = vlaneseq
      %v653 = vshrl.u32 %v652, 7
      %v654 = vsub.s32 0, %v653
      %v655 = vrot.slane %v621, %v654
      %v656 = vlaneseq
      %v657 = vshrl.u32 %v656, 7
      %v658 = vsub.s32 0, %v657
      %v659 = vrot.slane %v626, %v658
      %v660 = vlaneseq
      %v661 = vshrl.u32 %v660, 7
      %v662 = vsub.s32 0, %v661
      %v663 = vrot.slane %v629, %v662
      %v664 = vsub.f32 %v602, %v635
      %v665 = vsub.f32 %v605, %v639
      %v666 = vsub.f32 %v610, %v643
      %v667 = vsub.f32 %v613, %v647
      %v668 = vsub.f32 %v618, %v651
      %v669 = vsub.f32 %v621, %v655
      %v670 = vsub.f32 %v626, %v659
      %v671 = vsub.f32 %v629, %v663
      %v672 = vmul.f32 %v664, %v664
      %v673 = vmul.f32 %v665, %v665
      %v674 = vmul.f32 %v666, %v666
      %v675 = vmul.f32 %v667, %v667
      %v676 = vmul.f32 %v668, %v668
      %v677 = vmul.f32 %v669, %v669
      %v678 = vmul.f32 %v670, %v670
      %v679 = vmul.f32 %v671, %v671
      %vm680 = vcmask 64513
      %v681 = vsel %vm680, %v672, 0.0
      %682 = vadd.xlane.f32.xlu0 %v681
      %v683 = vpop.xlane.xlu0 %682
      %v684 = vsel %vm680, %v673, 0.0
      %685 = vadd.xlane.f32.xlu0 %v684
      %v686 = vpop.xlane.xlu0 %685
      %v687 = vsel %vm680, %v674, 0.0
      %688 = vadd.xlane.f32.xlu0 %v687
      %v689 = vpop.xlane.xlu0 %688
      %v690 = vsel %vm680, %v675, 0.0
      %691 = vadd.xlane.f32.xlu0 %v690
      %v692 = vpop.xlane.xlu0 %691
      %v693 = vsel %vm680, %v676, 0.0
      %694 = vadd.xlane.f32.xlu0 %v693
      %v695 = vpop.xlane.xlu0 %694
      %v696 = vsel %vm680, %v677, 0.0
      %697 = vadd.xlane.f32.xlu0 %v696
      %v698 = vpop.xlane.xlu0 %697
      %v699 = vsel %vm680, %v678, 0.0
      %700 = vadd.xlane.f32.xlu0 %v699
      %v701 = vpop.xlane.xlu0 %700
      %v702 = vsel %vm680, %v679, 0.0
      %703 = vadd.xlane.f32.xlu0 %v702
      %v704 = vpop.xlane.xlu0 %703
      %v705 = vrsqrt.pop %v683
      %v706 = vmul.f32 %v683, %v705
      %vm707 = vcmp.eq.f32.partialorder %v683, inf
      %v708 = vsel %vm707, %v683, %v706
      %vm709 = vcmp.eq.f32.partialorder %v683, 0.0
      %v710 = vand.u32 %v683, 2147483648
      %v711 = vsel %vm709, %v710, %v708
      %v712 = vrsqrt.pop %v686
      %v713 = vmul.f32 %v686, %v712
      %vm714 = vcmp.eq.f32.partialorder %v686, inf
      %v715 = vsel %vm714, %v686, %v713
      %vm716 = vcmp.eq.f32.partialorder %v686, 0.0
      %v717 = vand.u32 %v686, 2147483648
      %v718 = vsel %vm716, %v717, %v715
      %v719 = vrsqrt.pop %v689
      %v720 = vmul.f32 %v689, %v719
      %vm721 = vcmp.eq.f32.partialorder %v689, inf
      %v722 = vsel %vm721, %v689, %v720
      %vm723 = vcmp.eq.f32.partialorder %v689, 0.0
      %v724 = vand.u32 %v689, 2147483648
      %v725 = vsel %vm723, %v724, %v722
      %v726 = vrsqrt.pop %v692
      %v727 = vmul.f32 %v692, %v726
      %vm728 = vcmp.eq.f32.partialorder %v692, inf
      %v729 = vsel %vm728, %v692, %v727
      %vm730 = vcmp.eq.f32.partialorder %v692, 0.0
      %v731 = vand.u32 %v692, 2147483648
      %v732 = vsel %vm730, %v731, %v729
      %v733 = vrsqrt.pop %v695
      %v734 = vmul.f32 %v695, %v733
      %vm735 = vcmp.eq.f32.partialorder %v695, inf
      %v736 = vsel %vm735, %v695, %v734
      %vm737 = vcmp.eq.f32.partialorder %v695, 0.0
      %v738 = vand.u32 %v695, 2147483648
      %v739 = vsel %vm737, %v738, %v736
      %v740 = vrsqrt.pop %v698
      %v741 = vmul.f32 %v698, %v740
      %vm742 = vcmp.eq.f32.partialorder %v698, inf
      %v743 = vsel %vm742, %v698, %v741
      %vm744 = vcmp.eq.f32.partialorder %v698, 0.0
      %v745 = vand.u32 %v698, 2147483648
      %v746 = vsel %vm744, %v745, %v743
      %v747 = vrsqrt.pop %v701
      %v748 = vmul.f32 %v701, %v747
      %vm749 = vcmp.eq.f32.partialorder %v701, inf
      %v750 = vsel %vm749, %v701, %v748
      %vm751 = vcmp.eq.f32.partialorder %v701, 0.0
      %v752 = vand.u32 %v701, 2147483648
      %v753 = vsel %vm751, %v752, %v750
      %v754 = vrsqrt.pop %v704
      %v755 = vmul.f32 %v704, %v754
      %vm756 = vcmp.eq.f32.partialorder %v704, inf
      %v757 = vsel %vm756, %v704, %v755
      %vm758 = vcmp.eq.f32.partialorder %v704, 0.0
      %v759 = vand.u32 %v704, 2147483648
      %v760 = vsel %vm758, %v759, %v757
      %v761 = vsub.f32 0.0, %v711
      %v762 = vsub.f32 0.0, %v718
      %v763 = vsub.f32 0.0, %v725
      %v764 = vsub.f32 0.0, %v732
      %v765 = vsub.f32 0.0, %v739
      %v766 = vsub.f32 0.0, %v746
      %v767 = vsub.f32 0.0, %v753
      %v768 = vsub.f32 0.0, %v760
      %v777 = vadd.s32 %v227, 1
      %v778 = vlaneseq
      %v779 = vshrl.u32 %v778, 7
      %v780 = vsub.s32 %v777, %v779
      %v781 = vrot.slane %v761, %v780
      %v782 = vlaneseq
      %v783 = vshrl.u32 %v782, 7
      %v784 = vsub.s32 %v777, %v783
      %v785 = vrot.slane %v762, %v784
      %v786 = vlaneseq
      %v787 = vshrl.u32 %v786, 7
      %v788 = vsub.s32 %v777, %v787
      %v789 = vrot.slane %v763, %v788
      %v790 = vlaneseq
      %v791 = vshrl.u32 %v790, 7
      %v792 = vsub.s32 %v777, %v791
      %v793 = vrot.slane %v764, %v792
      %v794 = vlaneseq
      %v795 = vshrl.u32 %v794, 7
      %v796 = vsub.s32 %v777, %v795
      %v797 = vrot.slane %v765, %v796
      %v798 = vlaneseq
      %v799 = vshrl.u32 %v798, 7
      %v800 = vsub.s32 %v777, %v799
      %v801 = vrot.slane %v766, %v800
      %v802 = vlaneseq
      %v803 = vshrl.u32 %v802, 7
      %v804 = vsub.s32 %v777, %v803
      %v805 = vrot.slane %v767, %v804
      %v806 = vlaneseq
      %v807 = vshrl.u32 %v806, 7
      %v808 = vsub.s32 %v777, %v807
      %v809 = vrot.slane %v768, %v808
      %vm810 = vcmask 1042434
      %v811 = vsel %vm810, %v785, %v781
      %vm812 = vcmask 1043459
      %v813 = vsel %vm812, %v789, %v811
      %vm814 = vcmask 1044484
      %v815 = vsel %vm814, %v793, %v813
      %vm816 = vcmask 1045509
      %v817 = vsel %vm816, %v797, %v815
      %vm818 = vcmask 1046534
      %v819 = vsel %vm818, %v801, %v817
      %vm820 = vcmask 1047559
      %v821 = vsel %vm820, %v805, %v819
      %vm824 = vcmask 56321
      %825 = vst.msk [vmem:[%s224 - $0x1] sm:$0xfe] %vm824, %v821
      %vm826 = vcmask 49152
      %827 = vst.msk [vmem:[%s224 + $0x7] sm:$0x1] %vm826, %v809
      %p828 = scmp.lt.s32.totalorder %s16, 1
      %s829 = scalar_select %p828, %s16, 1
      %s830 = smul.addr %s829, 8
      %s831 = scalar_lea.vmem %s5, %s830
      // Predicated region
      $region41: #{tpu_custom_call.1} parent=39 // pred_check
        %p832 = pneg %p144
      $region42: #{tpu_custom_call.1} parent=39 // pred_check_branch
        %834 = sbr.rel (%p832) target = $region44
      $region43: #{tpu_custom_call.1} parent=39 // pred_region
        _
      $region44: #{tpu_custom_call.1} parent=39 // pred_fallthru
        _
    $region40: #{tpu_custom_call.1} parent=5 // pred_fallthru
      _
    %p835 = scmp.le.s32.totalorder 2, %s11
    // Predicated region
    $region45: #{tpu_custom_call.1} parent=5 // pred_check
      %p836 = pneg %p835
    $region46: #{tpu_custom_call.1} parent=5 // pred_check_branch
      %838 = sbr.rel (%p836) target = $region48
    $region47: #{tpu_custom_call.1} parent=5 // pred_region
      %s839 = ssub.s32 %s11, 2
      // Predicated region
      $region49: #{tpu_custom_call.1} parent=47 // pred_check
        %p840 = pneg %p150
      $region50: #{tpu_custom_call.1} parent=47 // pred_check_branch
        %842 = sbr.rel (%p840) target = $region52
      $region51: #{tpu_custom_call.1} parent=47 // pred_region
        %p843 = scmp.lt.s32.totalorder %s17, 1
        %s844 = scalar_select %p843, %s17, 1
        %s845 = smul.addr %s844, 8
        %s846 = scalar_lea.vmem %s5, %s845
      $region52: #{tpu_custom_call.1} parent=47 // pred_fallthru
        _
    $region48: #{tpu_custom_call.1} parent=5 // pred_fallthru
      _
  $region6: #{tpu_custom_call.1} parent=0 // loop_footer
    %s15 = sadd.s32 1, %s11
  $region7: #{tpu_custom_call.1} parent=0 // loop_footer_branch
    %10 = sbr.rel target = $region3
  $region8: #{tpu_custom_call.1} parent=0 // loop_exit
    _

</llo_original>
